<compile_context>
chip_gen: v7x
topology: tpu7x:2x2x1
jax: 0.10.0
libtpu: 0.0.40
codegen_flags: <defaults>
</compile_context>

<pallas_src>
import functools
import math

import jax
import jax.numpy as jnp
from jax.experimental import pallas as pl
from jax.experimental.pallas import tpu as pltpu


# ----------------------------- small helpers --------------------------------

def _quadruple(v):
    if isinstance(v, (tuple, list)):
        assert len(v) == 4, "4D parameter expected!"
        return tuple(int(e) for e in v)
    return (int(v),) * 4


def _round_up(v, m):
    return ((v + m - 1) // m) * m


def _cdiv(a, b):
    return (a + b - 1) // b


def _vmem_is_large():
    """True on 128 MiB-VMEM chips (v5e/v6e); False on v7x (64 MiB) / unknown."""
    try:
        info = pltpu.get_tpu_info()
        cap = getattr(info, "vmem_capacity_bytes", None)
        return bool(cap) and cap >= 100 * 1024 * 1024
    except Exception:
        return False


def _choose_tm(M):
    if M <= 256:
        return max(16, _round_up(M, 16))      # single small tile, bf16-packable
    cap = 1024 if _vmem_is_large() else 512   # v5e/v6e afford tm=1024; v7x stays 512
    tm = min(cap, _round_up(M, 256))          # 256-aligned for the 256x256 MXU
    while tm > 256 and _cdiv(M, tm) < 2:      # keep >=2 M tiles for v7x's 2 TCs
        tm -= 256
    return tm


# ----------------------------- Pallas kernel --------------------------------

def _conv_gemm_kernel(p_ref, w_ref, b_ref, o_ref, *scratch,
                      tk, weight_resident, use_acc):
    """One (tm, tn) tile of  out = patches @ weights + bias.

    p_ref : (tm, tk)                         patches tile (compute dtype)
    w_ref : (K_pad, tn) if weight_resident else (tk, tn)
    b_ref : (1, tn)                          f32 bias row (zeros when no bias)
    o_ref : (tm, tn)                         output tile (resident across k)
    scratch: optional (tm, tn) f32 accumulator (only when o_ref is not f32)
    """
    k = pl.program_id(2)
    acc_ref = scratch[0] if use_acc else o_ref

    @pl.when(k == 0)
    def _init():
        acc_ref[...] = jnp.broadcast_to(b_ref[...], acc_ref.shape).astype(jnp.float32)

    if weight_resident:
        w = w_ref[pl.ds(pl.multiple_of(k * tk, tk), tk), :]
    else:
        w = w_ref[...]
    acc_ref[...] += jnp.dot(p_ref[...], w, preferred_element_type=jnp.float32)

    if use_acc:
        @pl.when(k == pl.num_programs(2) - 1)
        def _finalize():
            o_ref[...] = acc_ref[...].astype(o_ref.dtype)


def _conv_gemm(p2d, w2d, bias, *, compute_dtype, out_dtype):
    """out[M, C_out] = p2d[M, K] @ w2d[K, C_out] (+ bias), via one pallas_call."""
    M, K = p2d.shape
    Kw, N = w2d.shape
    assert Kw == K

    cbytes = jnp.dtype(compute_dtype).itemsize
    obytes = jnp.dtype(out_dtype).itemsize
    use_acc = jnp.dtype(out_dtype) != jnp.dtype(jnp.float32)

    # Lane-dense N, deep K tiles (pad K up to a multiple of tk), aligned M tiles.
    N_pad = _round_up(N, 128)
    tn = 256 if N_pad % 256 == 0 else 128

    K128 = _round_up(K, 128)
    if K128 <= 2048:
        tk = K128
        K_pad = K128
    else:
        tk = next((c for c in (2048, 1024, 512)
                   if _round_up(K128, c) - K128 <= max(K128 // 8, 512)), 512)
        K_pad = _round_up(K128, tk)

    tm = _choose_tm(M)
    M_pad = _round_up(M, tm)

    # Keep the (small) weight matrix resident in VMEM whenever it fits.
    weight_resident = (2 * K_pad * tn * cbytes) <= (16 << 20)
    w_block_rows = K_pad if weight_resident else tk
    w_index_map = ((lambda i, j, k: (0, j)) if weight_resident
                   else (lambda i, j, k: (k, j)))

    # Operands arrive already in compute_dtype; one combined pad per operand.
    # TODO(synk): fold the M/K zero-pad into the patch construction pass.
    p_pad = jnp.pad(p2d, ((0, M_pad - M), (0, K_pad - K)))
    w_pad = jnp.pad(w2d.astype(compute_dtype), ((0, K_pad - K), (0, N_pad - N)))
    b_row = jnp.zeros((1, N_pad), jnp.float32)
    if bias is not None:
        b_row = b_row.at[0, :N].set(bias.astype(jnp.float32))

    grid = (M_pad // tm, N_pad // tn, K_pad // tk)

    kernel = functools.partial(_conv_gemm_kernel, tk=tk,
                               weight_resident=weight_resident, use_acc=use_acc)

    # Size the VMEM request from the actual footprint; cap at 48 MiB so it is
    # valid on v7x (64 MiB per-TC VMEM) as well as v5e/v6e (128 MiB).
    vmem_need = (2 * tm * tk * cbytes                 # patches, double-buffered
                 + 2 * w_block_rows * tn * cbytes     # weights
                 + 2 * tn * 4                         # bias row
                 + 2 * tm * tn * obytes               # output
                 + (tm * tn * 4 if use_acc else 0))   # f32 accumulator
    vmem_limit = int(min(max(vmem_need + (8 << 20), 16 << 20), 48 << 20))

    # TODO(synk): sweep pipeline_mode=pl.Buffered(3) on the patches spec on v7x.
    out = pl.pallas_call(
        kernel,
        out_shape=jax.ShapeDtypeStruct((M_pad, N_pad), out_dtype),
        grid_spec=pltpu.PrefetchScalarGridSpec(
            num_scalar_prefetch=0,
            grid=grid,
            in_specs=[
                pl.BlockSpec((tm, tk), lambda i, j, k: (i, k)),          # patches
                pl.BlockSpec((w_block_rows, tn), w_index_map),           # weights
                pl.BlockSpec((1, tn), lambda i, j, k: (0, j)),           # bias row
            ],
            out_specs=pl.BlockSpec((tm, tn), lambda i, j, k: (i, j)),
            scratch_shapes=([pltpu.VMEM((tm, tn), jnp.float32)] if use_acc else []),
        ),
        compiler_params=pltpu.CompilerParams(
            dimension_semantics=("parallel", "parallel", "arbitrary"),
            vmem_limit_bytes=vmem_limit,
        ),
        cost_estimate=pl.CostEstimate(
            flops=2 * M_pad * K_pad * N_pad,
            transcendentals=0,
            bytes_accessed=(M_pad * K_pad * cbytes + K_pad * N_pad * cbytes
                            + M_pad * N_pad * obytes),
        ),
    )(p_pad, w_pad, b_row)

    return out[:M, :N]


# --------------------------------- Conv4d ------------------------------------

class Conv4d:
    """JAX/Pallas port of the PyTorch Conv4d module (groups=1, zero padding)."""

    def __init__(self, in_channels, out_channels, kernel_size,
                 stride=(1, 1, 1, 1), padding=(0, 0, 0, 0),
                 dilation=(1, 1, 1, 1), groups=1, bias=False,
                 padding_mode="zeros", *, key, compute_dtype=jnp.bfloat16,
                 out_dtype=None, channels_last_output=False):
        kernel_size = _quadruple(kernel_size)
        stride = _quadruple(stride)
        padding = _quadruple(padding)
        dilation = _quadruple(dilation)
        if in_channels % groups != 0:
            raise ValueError("in_channels must be divisible by groups")
        if out_channels % groups != 0:
            raise ValueError("out_channels must be divisible by groups")
        if padding_mode != "zeros":
            raise ValueError("padding_mode must be 'zeros'")
        assert groups == 1, "Groups other than 1 not yet implemented!"

        self.in_channels = in_channels
        self.out_channels = out_channels
        self.kernel_size = kernel_size
        self.stride = stride
        self.padding = padding
        self.dilation = dilation
        self.groups = groups
        self.compute_dtype = compute_dtype
        self.out_dtype = out_dtype                 # None -> x.dtype
        self.channels_last_output = channels_last_output

        # kaiming_uniform_(a=sqrt(5))  =>  U(-1/sqrt(fan_in), 1/sqrt(fan_in))
        fan_in = in_channels * math.prod(kernel_size)
        bound = 1.0 / math.sqrt(fan_in)
        wkey, bkey = jax.random.split(key)
        self.weight = jax.random.uniform(
            wkey, (out_channels, in_channels) + kernel_size,
            minval=-bound, maxval=bound, dtype=jnp.float32)
        self.bias = (jax.random.uniform(bkey, (out_channels,),
                                        minval=-bound, maxval=bound,
                                        dtype=jnp.float32)
                     if bias else None)

    def __call__(self, x):
        B, C, L_i, D_i, H_i, W_i = x.shape
        assert C == self.in_channels
        k_l, k_d, k_h, k_w = self.kernel_size
        s_l, s_d, s_h, s_w = self.stride
        p_l, p_d, p_h, p_w = self.padding
        d_l, d_d, d_h, d_w = self.dilation
        cd = self.compute_dtype

        # Same output-size formulas as the reference module.
        L_o = (L_i + 2 * p_l - k_l - (k_l - 1) * (d_l - 1)) // s_l + 1
        D_o = (D_i + 2 * p_d - k_d - (k_d - 1) * (d_d - 1)) // s_d + 1
        H_o = (H_i + 2 * p_h - k_h - (k_h - 1) * (d_h - 1)) // s_h + 1
        W_o = (W_i + 2 * p_w - k_w - (k_w - 1) * (d_w - 1)) // s_w + 1

        patch_embed = (self.stride == self.kernel_size
                       and self.padding == (0, 0, 0, 0)
                       and self.dilation == (1, 1, 1, 1))

        if patch_embed:
            # ViT patch-embed fast path: pure reshape/transpose, no im2col
            # amplification and no extra padding pass over amplified data.
            xc = x[:, :, :L_o * k_l, :D_o * k_d, :H_o * k_h, :W_o * k_w].astype(cd)
            xr = xc.reshape(B, C, L_o, k_l, D_o, k_d, H_o, k_h, W_o, k_w)
            patches = xr.transpose(0, 2, 4, 6, 8, 1, 3, 5, 7, 9)
            # (B, Lo, Do, Ho, Wo, C, kl, kd, kh, kw)
        else:
            # General path: cast to compute dtype and go channels-last BEFORE
            # tap extraction (halves the amplified-tensor traffic).
            # TODO(synk): gather the taps in-kernel (tap grid axis + strided DMA
            # from a pl.ANY input) to remove the prod(kernel_size)x patch
            # materialization entirely.
            xp = jnp.pad(x, ((0, 0), (0, 0),
                             (p_l, p_l), (p_d, p_d), (p_h, p_h), (p_w, p_w)))
            xp = xp.astype(cd).transpose(0, 2, 3, 4, 5, 1)  # (B, Lp, Dp, Hp, Wp, C)
            taps = []
            for il in range(k_l):
                l0 = il * d_l
                for idp in range(k_d):
                    d0 = idp * d_d
                    for ih in range(k_h):
                        h0 = ih * d_h
                        for iw in range(k_w):
                            w0 = iw * d_w
                            taps.append(
                                xp[:,
                                   l0:l0 + (L_o - 1) * s_l + 1:s_l,
                                   d0:d0 + (D_o - 1) * s_d + 1:s_d,
                                   h0:h0 + (H_o - 1) * s_h + 1:s_h,
                                   w0:w0 + (W_o - 1) * s_w + 1:s_w,
                                   :])
            patches = jnp.stack(taps, axis=-1)   # (B, Lo, Do, Ho, Wo, C, T)

        M = B * L_o * D_o * H_o * W_o
        K = C * k_l * k_d * k_h * k_w
        p2d = patches.reshape(M, K)
        # Weight flat index order (C_in, kl, kd, kh, kw) matches the patch order.
        w2d = self.weight.reshape(self.out_channels, K).T   # (K, C_out)

        out_dtype = self.out_dtype if self.out_dtype is not None else x.dtype
        out2d = _conv_gemm(p2d, w2d, self.bias,
                           compute_dtype=cd, out_dtype=out_dtype)

        out = out2d.reshape(B, L_o, D_o, H_o, W_o, self.out_channels)
        if self.channels_last_output:
            return out                       # lane-dense layout, no extra pass
        return out.transpose(0, 5, 1, 2, 3, 4)   # channels-first (API parity)


# ----------------------------- pure-JAX reference ----------------------------

def conv4d_reference(x, weight, bias, stride, padding, dilation):
    B, C, L_i, D_i, H_i, W_i = x.shape
    C_out = weight.shape[0]
    k_l, k_d, k_h, k_w = weight.shape[2:]
    s_l, s_d, s_h, s_w = stride
    p_l, p_d, p_h, p_w = padding
    d_l, d_d, d_h, d_w = dilation
    L_o = (L_i + 2 * p_l - k_l - (k_l - 1) * (d_l - 1)) // s_l + 1
    D_o = (D_i + 2 * p_d - k_d - (k_d - 1) * (d_d - 1)) // s_d + 1
    H_o = (H_i + 2 * p_h - k_h - (k_h - 1) * (d_h - 1)) // s_h + 1
    W_o = (W_i + 2 * p_w - k_w - (k_w - 1) * (d_w - 1)) // s_w + 1
    xp = jnp.pad(x, ((0, 0), (0, 0),
                     (p_l, p_l), (p_d, p_d), (p_h, p_h), (p_w, p_w)))
    out = jnp.zeros((B, C_out, L_o, D_o, H_o, W_o), jnp.float32)
    for il in range(k_l):
        for idp in range(k_d):
            for ih in range(k_h):
                for iw in range(k_w):
                    sl = xp[:, :,
                            il * d_l:il * d_l + (L_o - 1) * s_l + 1:s_l,
                            idp * d_d:idp * d_d + (D_o - 1) * s_d + 1:s_d,
                            ih * d_h:ih * d_h + (H_o - 1) * s_h + 1:s_h,
                            iw * d_w:iw * d_w + (W_o - 1) * s_w + 1:s_w]
                    out = out + jnp.einsum("bcldhw,oc->boldhw",
                                           sl, weight[:, :, il, idp, ih, iw])
    if bias is not None:
        out = out + bias.reshape(1, -1, 1, 1, 1, 1)
    return out


# ----------------------------------- demo ------------------------------------

if __name__ == "__main__":
    key = jax.random.PRNGKey(0)
    kx1, kp1, kx2, kp2 = jax.random.split(key, 4)

    # --- Config 1: ViT patch-embed case (fast reshape path, no im2col) -------
    x1 = jax.random.normal(kx1, (2, 4, 4, 8, 8, 8), dtype=jnp.float32)
    conv1 = Conv4d(4, 32, kernel_size=(2, 4, 4, 4), stride=(2, 4, 4, 4),
                   padding=0, dilation=1, bias=True, key=kp1,
                   compute_dtype=jnp.bfloat16)
    out1 = jax.block_until_ready(conv1(x1))
    ref1 = jax.block_until_ready(conv4d_reference(
        x1, conv1.weight, conv1.bias, conv1.stride, conv1.padding, conv1.dilation))
    assert out1.shape == ref1.shape, (out1.shape, ref1.shape)
    assert jnp.allclose(out1, ref1, atol=1e-1, rtol=1e-1), \
        float(jnp.max(jnp.abs(out1 - ref1)))

    # bf16 output path (f32 VMEM accumulator + final cast inside the kernel)
    conv1.out_dtype = jnp.bfloat16
    out1b = jax.block_until_ready(conv1(x1))
    assert jnp.allclose(out1b.astype(jnp.float32), ref1, atol=2e-1, rtol=2e-1)
    conv1.out_dtype = None

    # --- Config 2: general stride / padding / dilation (im2col path) ---------
    x2 = jax.random.normal(kx2, (2, 4, 5, 6, 9, 10), dtype=jnp.float32)
    conv2 = Conv4d(4, 8, kernel_size=(2, 3, 3, 3), stride=(1, 1, 2, 1),
                   padding=(1, 1, 1, 0), dilation=(1, 1, 1, 2), bias=True,
                   key=kp2, compute_dtype=jnp.bfloat16)
    out2 = jax.block_until_ready(conv2(x2))
    ref2 = jax.block_until_ready(conv4d_reference(
        x2, conv2.weight, conv2.bias, conv2.stride, conv2.padding, conv2.dilation))
    assert out2.shape == ref2.shape, (out2.shape, ref2.shape)
    assert jnp.allclose(out2, ref2, atol=1e-1, rtol=1e-1), \
        float(jnp.max(jnp.abs(out2 - ref2)))

    # f32 compute path (exact-semantics check, accumulates directly in o_ref)
    conv2.compute_dtype = jnp.float32
    out2f = jax.block_until_ready(conv2(x2))
    assert jnp.allclose(out2f, ref2, atol=2e-2, rtol=2e-2), \
        float(jnp.max(jnp.abs(out2f - ref2)))

    print("KERNEL_OK")
</pallas_src>

<mosaic_0001>
module attributes {stable_mosaic.version = 11 : i64} {
  func.func @_conv_gemm_kernel(%arg0: i32, %arg1: i32, %arg2: i32, %arg3: memref<32x512xbf16, #tpu.memory_space<vmem>>, %arg4: memref<512x128xbf16, #tpu.memory_space<vmem>>, %arg5: memref<1x128xf32, #tpu.memory_space<vmem>>, %arg6: memref<32x128xf32, #tpu.memory_space<vmem>>) attributes {dimension_semantics = [#tpu.dimension_semantics<parallel>, #tpu.dimension_semantics<parallel>, #tpu.dimension_semantics<arbitrary>], iteration_bounds = array<i64: 1, 1, 1>, scalar_prefetch = 0 : i64, scratch_operands = 0 : i64, tpu.core_type = #tpu.core_type<tc>, window_params = [{transform_indices = @transform_0, window_bounds = array<i64: 32, 512>}, {transform_indices = @transform_1, window_bounds = array<i64: 512, 128>}, {transform_indices = @transform_2, window_bounds = array<i64: 1, 128>}, {transform_indices = @transform_3, window_bounds = array<i64: 32, 128>}]} {
    %c0_i32 = arith.constant 0 : i32
    %0 = arith.cmpi eq, %arg2, %c0_i32 : i32
    %1 = arith.extui %0 : i1 to i32
    %c0_i32_0 = arith.constant 0 : i32
    %2 = arith.cmpi ne, %1, %c0_i32_0 : i32
    scf.if %2 {
      %c0_7 = arith.constant 0 : index
      %c0_8 = arith.constant 0 : index
      %12 = vector.load %arg5[%c0_7, %c0_8] : memref<1x128xf32, #tpu.memory_space<vmem>>, vector<1x128xf32>
      %13 = vector.shape_cast %12 : vector<1x128xf32> to vector<1x128xf32>
      %14 = vector.broadcast %13 : vector<1x128xf32> to vector<32x128xf32>
      %c0_9 = arith.constant 0 : index
      %c0_10 = arith.constant 0 : index
      %15 = vector.load %arg6[%c0_9, %c0_10] : memref<32x128xf32, #tpu.memory_space<vmem>>, vector<32x128xf32>
      tpu.vector_store %arg6[%c0_9, %c0_10], %14 {strides = array<i32>} : memref<32x128xf32, #tpu.memory_space<vmem>>, vector<32x128xf32>,
    } else {
    }
    %c512_i32 = arith.constant 512 : i32
    %3 = arith.muli %arg2, %c512_i32 : i32
    %4 = tpu.assume_multiple %3, 512 : i32
    %5 = arith.index_cast %4 : i32 to index
    %c0 = arith.constant 0 : index
    %6 = vector.load %arg4[%5, %c0] : memref<512x128xbf16, #tpu.memory_space<vmem>>, vector<512x128xbf16>
    %c0_1 = arith.constant 0 : index
    %c0_2 = arith.constant 0 : index
    %7 = vector.load %arg6[%c0_1, %c0_2] : memref<32x128xf32, #tpu.memory_space<vmem>>, vector<32x128xf32>
    %c0_3 = arith.constant 0 : index
    %c0_4 = arith.constant 0 : index
    %8 = vector.load %arg3[%c0_3, %c0_4] : memref<32x512xbf16, #tpu.memory_space<vmem>>, vector<32x512xbf16>
    %cst = arith.constant dense<0.000000e+00> : vector<32x128xf32>
    %9 = tpu.matmul %8, %6, %cst {dimension_numbers = #tpu.dot_dimension_numbers<[1], [0], [0], [1], [0, 0, 1, 1], [], []>} : vector<32x512xbf16>, vector<512x128xbf16>, vector<32x128xf32> -> vector<32x128xf32>
    %10 = arith.addf %7, %9 : vector<32x128xf32>
    %c0_5 = arith.constant 0 : index
    %c0_6 = arith.constant 0 : index
    %11 = vector.load %arg6[%c0_5, %c0_6] : memref<32x128xf32, #tpu.memory_space<vmem>>, vector<32x128xf32>
    tpu.vector_store %arg6[%c0_5, %c0_6], %10 {strides = array<i32>} : memref<32x128xf32, #tpu.memory_space<vmem>>, vector<32x128xf32>,
    return
  }
  func.func @transform_0(%arg0: i32, %arg1: i32, %arg2: i32) -> (i32, i32) {
    %c0_i32 = arith.constant 0 : i32
    return %arg0, %arg2 : i32, i32
  }
  func.func @transform_1(%arg0: i32, %arg1: i32, %arg2: i32) -> (i32, i32) {
    %c0_i32 = arith.constant 0 : i32
    %c0_i32_0 = arith.constant 0 : i32
    return %c0_i32, %arg1 : i32, i32
  }
  func.func @transform_2(%arg0: i32, %arg1: i32, %arg2: i32) -> (i32, i32) {
    %c0_i32 = arith.constant 0 : i32
    %c0_i32_0 = arith.constant 0 : i32
    return %c0_i32, %arg1 : i32, i32
  }
  func.func @transform_3(%arg0: i32, %arg1: i32, %arg2: i32) -> (i32, i32) {
    %c0_i32 = arith.constant 0 : i32
    return %arg0, %arg1 : i32, i32
  }
}

</mosaic_0001>

<llo_original>
// kernel: tpu_custom_call.1
$region0: #{tpu_custom_call.1}
  #allocation0 [shape = 'u32[]', space=smem, size = 0x4, offset = 0x4, fixed_abs, tag = 'smem constant byte address 0x4 - core index']
  #allocation1 [shape = 'u32[144,128]{1,0:T(1,128)}', space=vmem, size = 0x12000, scoped, tag = 'internal scratch']
  %s0 = inlined_call_operand.hbm [shape: bf16[32,512], index: 0, kind: input, shape index: {}]
  %s1 = inlined_call_operand.hbm [shape: bf16[512,128], index: 1, kind: input, shape index: {}]
  %s2 = inlined_call_operand.vmem [shape: f32[1,128], index: 2, kind: input, shape index: {}]
  %s3 = inlined_call_operand.hbm [shape: f32[32,128], index: 3, kind: output, shape index: {}]
  %s4 = sld [smem:[#allocation0]]
  $region34: #{tpu_custom_call.1} parent=0
    _
  %s6 = ssub.s32 1, %s4
  %s7 = scalar_select 0, %s6, %s4
  $region1: #{tpu_custom_call.1} parent=0
    #allocation2 [shape = 'u8[32768]{0}', space=vmem, size = 0x8000, scoped, tag = 'input window, operand 0, single buffered']
    #allocation3 [shape = 's32[1]{0}', space=sflag, size = 0x4, scoped, tag = 'scoped memory for tpu_custom_call.1']
    #allocation4 [shape = 's32[1]{0}', space=sflag, size = 0x4, scoped, tag = 'scoped memory for tpu_custom_call.1']
    #allocation5 [shape = 'u8[131072]{0}', space=vmem, size = 0x20000, scoped, tag = 'input window, operand 1, single buffered']
    #allocation6 [shape = 's32[1]{0}', space=sflag, size = 0x4, scoped, tag = 'scoped memory for tpu_custom_call.1']
    #allocation7 [shape = 'u8[16384]{0}', space=vmem, size = 0x4000, scoped, tag = 'output window, operand 0, single buffered']
    %8 = vsyncpa [#allocation3], 0
    %9 = vsyncpa [#allocation6], 0
    %10 = vsyncpa [#allocation4], 0
    // Predicated region
    $region2: #{tpu_custom_call.1} parent=1 // pred_check
      _
    $region3: #{tpu_custom_call.1} parent=1 // pred_check_branch
      %12 = sbr.rel (0) target = $region5
    $region4: #{tpu_custom_call.1} parent=1 // pred_region
      %s14 = ssub.s32 1024, 1024
      %15 = vsyncadd [#allocation3], %s14
      %s16 = sshll.u32 [#allocation2], 4
      %s17 = int_to_ptr.vmem [resolvable:$true] %s16
      %22 = dma.hbm_to_vmem [thread:$0]  %s0, 1024, %s17, [#allocation3], 256, 256, 16
    $region5: #{tpu_custom_call.1} parent=1 // pred_fallthru
      _
    // Predicated region
    $region6: #{tpu_custom_call.1} parent=1 // pred_check
      _
    $region7: #{tpu_custom_call.1} parent=1 // pred_check_branch
      %24 = sbr.rel (0) target = $region9
    $region8: #{tpu_custom_call.1} parent=1 // pred_region
      %s26 = ssub.s32 4096, 4096
      %27 = vsyncadd [#allocation6], %s26
      %s28 = sshll.u32 [#allocation5], 4
      %s29 = int_to_ptr.vmem [resolvable:$true] %s28
      %34 = dma.hbm_to_vmem [thread:$0]  %s1, 4096, %s29, [#allocation6], 64, 64, 4
    $region9: #{tpu_custom_call.1} parent=1 // pred_fallthru
      _
    // Predicated region
    $region10: #{tpu_custom_call.1} parent=1 // pred_check
      _
    $region11: #{tpu_custom_call.1} parent=1 // pred_check_branch
      %36 = sbr.rel (0) target = $region13
    $region12: #{tpu_custom_call.1} parent=1 // pred_region
      _
    $region13: #{tpu_custom_call.1} parent=1 // pred_fallthru
      _
    // Predicated region
    $region14: #{tpu_custom_call.1} parent=1 // pred_check
      _
    $region15: #{tpu_custom_call.1} parent=1 // pred_check_branch
      %38 = sbr.rel (0) target = $region17
    $region16: #{tpu_custom_call.1} parent=1 // pred_region
      %39 = dma.done [#allocation3], 1024
    $region17: #{tpu_custom_call.1} parent=1 // pred_fallthru
      _
    // Predicated region
    $region18: #{tpu_custom_call.1} parent=1 // pred_check
      _
    $region19: #{tpu_custom_call.1} parent=1 // pred_check_branch
      %41 = sbr.rel (0) target = $region21
    $region20: #{tpu_custom_call.1} parent=1 // pred_region
      %42 = dma.done [#allocation6], 4096
    $region21: #{tpu_custom_call.1} parent=1 // pred_fallthru
      _
    %p44 = scmp.eq.s32.totalorder 0, 0
    // Predicated region
    $region22: #{tpu_custom_call.1} parent=1 // pred_check
      %p45 = pneg %p44
    $region23: #{tpu_custom_call.1} parent=1 // pred_check_branch
      %47 = sbr.rel (%p45) target = $region25
    $region24: #{tpu_custom_call.1} parent=1 // pred_region
      %v48 = vld [vmem:[%s2] sm:$0x1]
      %v50 = vlaneseq
      %v51 = vshrl.u32 %v50, 7
      %v52 = vsub.s32 0, %v51
      %v53 = vrot.slane %v48, %v52
      %55 = vst [vmem:[#allocation7] sm:$0xff] %v53
      %56 = vst [vmem:[#allocation7 + $0x8] sm:$0xff] %v53
      %57 = vst [vmem:[#allocation7 + $0x10] sm:$0xff] %v53
      %58 = vst [vmem:[#allocation7 + $0x18] sm:$0xff] %v53
    $region25: #{tpu_custom_call.1} parent=1 // pred_fallthru
      _
    %s59 = smul.u32 0, 512
    %s60 = sshra.s32 %s59, 3
    %s61 = sand.u32 %s59, 7
    %s62 = smul.addr %s60, 4
    %s63 = scalar_lea.vmem [#allocation5], %s62
    %v64 = vld [vmem:[%s63] sm:$0xf]
    %v65 = vld [vmem:[%s63 + $0x4] sm:$0xf]
    %v66 = vld [vmem:[%s63 + $0x8] sm:$0xf]
    %v67 = vld [vmem:[%s63 + $0xc] sm:$0xf]
    %v68 = vld [vmem:[%s63 + $0x10] sm:$0xf]
    %v69 = vld [vmem:[%s63 + $0x14] sm:$0xf]
    %v70 = vld [vmem:[%s63 + $0x18] sm:$0xf]
    %v71 = vld [vmem:[%s63 + $0x1c] sm:$0xf]
    %v72 = vld [vmem:[%s63 + $0x20] sm:$0xf]
    %v73 = vld [vmem:[%s63 + $0x24] sm:$0xf]
    %v74 = vld [vmem:[%s63 + $0x28] sm:$0xf]
    %v75 = vld [vmem:[%s63 + $0x2c] sm:$0xf]
    %v76 = vld [vmem:[%s63 + $0x30] sm:$0xf]
    %v77 = vld [vmem:[%s63 + $0x34] sm:$0xf]
    %v78 = vld [vmem:[%s63 + $0x38] sm:$0xf]
    %v79 = vld [vmem:[%s63 + $0x3c] sm:$0xf]
    %v80 = vld [vmem:[%s63 + $0x40] sm:$0xf]
    %v81 = vld [vmem:[%s63 + $0x44] sm:$0xf]
    %v82 = vld [vmem:[%s63 + $0x48] sm:$0xf]
    %v83 = vld [vmem:[%s63 + $0x4c] sm:$0xf]
    %v84 = vld [vmem:[%s63 + $0x50] sm:$0xf]
    %v85 = vld [vmem:[%s63 + $0x54] sm:$0xf]
    %v86 = vld [vmem:[%s63 + $0x58] sm:$0xf]
    %v87 = vld [vmem:[%s63 + $0x5c] sm:$0xf]
    %v88 = vld [vmem:[%s63 + $0x60] sm:$0xf]
    %v89 = vld [vmem:[%s63 + $0x64] sm:$0xf]
    %v90 = vld [vmem:[%s63 + $0x68] sm:$0xf]
    %v91 = vld [vmem:[%s63 + $0x6c] sm:$0xf]
    %v92 = vld [vmem:[%s63 + $0x70] sm:$0xf]
    %v93 = vld [vmem:[%s63 + $0x74] sm:$0xf]
    %v94 = vld [vmem:[%s63 + $0x78] sm:$0xf]
    %v95 = vld [vmem:[%s63 + $0x7c] sm:$0xf]
    %v96 = vld [vmem:[%s63 + $0x80] sm:$0xf]
    %v97 = vld [vmem:[%s63 + $0x84] sm:$0xf]
    %v98 = vld [vmem:[%s63 + $0x88] sm:$0xf]
    %v99 = vld [vmem:[%s63 + $0x8c] sm:$0xf]
    %v100 = vld [vmem:[%s63 + $0x90] sm:$0xf]
    %v101 = vld [vmem:[%s63 + $0x94] sm:$0xf]
    %v102 = vld [vmem:[%s63 + $0x98] sm:$0xf]
    %v103 = vld [vmem:[%s63 + $0x9c] sm:$0xf]
    %v104 = vld [vmem:[%s63 + $0xa0] sm:$0xf]
    %v105 = vld [vmem:[%s63 + $0xa4] sm:$0xf]
    %v106 = vld [vmem:[%s63 + $0xa8] sm:$0xf]
    %v107 = vld [vmem:[%s63 + $0xac] sm:$0xf]
    %v108 = vld [vmem:[%s63 + $0xb0] sm:$0xf]
    %v109 = vld [vmem:[%s63 + $0xb4] sm:$0xf]
    %v110 = vld [vmem:[%s63 + $0xb8] sm:$0xf]
    %v111 = vld [vmem:[%s63 + $0xbc] sm:$0xf]
    %v112 = vld [vmem:[%s63 + $0xc0] sm:$0xf]
    %v113 = vld [vmem:[%s63 + $0xc4] sm:$0xf]
    %v114 = vld [vmem:[%s63 + $0xc8] sm:$0xf]
    %v115 = vld [vmem:[%s63 + $0xcc] sm:$0xf]
    %v116 = vld [vmem:[%s63 + $0xd0] sm:$0xf]
    %v117 = vld [vmem:[%s63 + $0xd4] sm:$0xf]
    %v118 = vld [vmem:[%s63 + $0xd8] sm:$0xf]
    %v119 = vld [vmem:[%s63 + $0xdc] sm:$0xf]
    %v120 = vld [vmem:[%s63 + $0xe0] sm:$0xf]
    %v121 = vld [vmem:[%s63 + $0xe4] sm:$0xf]
    %v122 = vld [vmem:[%s63 + $0xe8] sm:$0xf]
    %v123 = vld [vmem:[%s63 + $0xec] sm:$0xf]
    %v124 = vld [vmem:[%s63 + $0xf0] sm:$0xf]
    %v125 = vld [vmem:[%s63 + $0xf4] sm:$0xf]
    %v126 = vld [vmem:[%s63 + $0xf8] sm:$0xf]
    %v127 = vld [vmem:[%s63 + $0xfc] sm:$0xf]
    %v128 = vld [vmem:[#allocation7] sm:$0xff]
    %v129 = vld [vmem:[#allocation7 + $0x8] sm:$0xff]
    %v130 = vld [vmem:[#allocation7 + $0x10] sm:$0xff]
    %v131 = vld [vmem:[#allocation7 + $0x18] sm:$0xff]
    %v132 = vld [vmem:[#allocation2] sm:$0xff]
    %v133 = vld [vmem:[#allocation2 + $0x8] sm:$0xff]
    %v134 = vld [vmem:[#allocation2 + $0x10] sm:$0xff]
    %v135 = vld [vmem:[#allocation2 + $0x18] sm:$0xff]
    %v136 = vld [vmem:[#allocation2 + $0x20] sm:$0xff]
    %v137 = vld [vmem:[#allocation2 + $0x28] sm:$0xff]
    %v138 = vld [vmem:[#allocation2 + $0x30] sm:$0xff]
    %v139 = vld [vmem:[#allocation2 + $0x38] sm:$0xff]
    %v148 = vunpack.c.l.b16 %v132
    %v149 = vunpack.c.h.b16 %v132
    %v150 = vunpack.c.l.b16 %v133
    %v151 = vunpack.c.h.b16 %v133
    %v152 = vunpack.c.l.b16 %v134
    %v153 = vunpack.c.h.b16 %v134
    %v154 = vunpack.c.l.b16 %v135
    %v155 = vunpack.c.h.b16 %v135
    %v156 = vunpack.c.l.b16 %v136
    %v157 = vunpack.c.h.b16 %v136
    %v158 = vunpack.c.l.b16 %v137
    %v159 = vunpack.c.h.b16 %v137
    %v160 = vunpack.c.l.b16 %v138
    %v161 = vunpack.c.h.b16 %v138
    %v162 = vunpack.c.l.b16 %v139
    %v163 = vunpack.c.h.b16 %v139
    %v164 = vpack.c.b16 %v152, %v148
    %v165 = vpack.c.b16 %v153, %v149
    %v166 = vpack.c.b16 %v154, %v150
    %v167 = vpack.c.b16 %v155, %v151
    %v168 = vpack.c.b16 %v160, %v156
    %v169 = vpack.c.b16 %v161, %v157
    %v170 = vpack.c.b16 %v162, %v158
    %v171 = vpack.c.b16 %v163, %v159
    %v244 = vunpack.c.l.b16 %v64
    %v245 = vunpack.c.l.b16 %v65
    %v246 = vunpack.c.l.b16 %v66
    %v247 = vunpack.c.l.b16 %v67
    %v248 = vunpack.c.l.b16 %v68
    %v249 = vunpack.c.l.b16 %v69
    %v250 = vunpack.c.l.b16 %v70
    %v251 = vunpack.c.l.b16 %v71
    %v252 = vunpack.c.l.b16 %v72
    %v253 = vunpack.c.l.b16 %v73
    %v254 = vunpack.c.l.b16 %v74
    %v255 = vunpack.c.l.b16 %v75
    %v256 = vunpack.c.l.b16 %v76
    %v257 = vunpack.c.l.b16 %v77
    %v258 = vunpack.c.l.b16 %v78
    %v259 = vunpack.c.l.b16 %v79
    %v260 = vunpack.c.l.b16 %v80
    %v261 = vunpack.c.l.b16 %v81
    %v262 = vunpack.c.l.b16 %v82
    %v263 = vunpack.c.l.b16 %v83
    %v264 = vunpack.c.l.b16 %v84
    %v265 = vunpack.c.l.b16 %v85
    %v266 = vunpack.c.l.b16 %v86
    %v267 = vunpack.c.l.b16 %v87
    %v268 = vunpack.c.l.b16 %v88
    %v269 = vunpack.c.l.b16 %v89
    %v270 = vunpack.c.l.b16 %v90
    %v271 = vunpack.c.l.b16 %v91
    %v272 = vunpack.c.l.b16 %v92
    %v273 = vunpack.c.l.b16 %v93
    %v274 = vunpack.c.l.b16 %v94
    %v275 = vunpack.c.l.b16 %v95
    %v276 = vunpack.c.l.b16 %v96
    %v277 = vunpack.c.l.b16 %v97
    %v278 = vunpack.c.l.b16 %v98
    %v279 = vunpack.c.l.b16 %v99
    %v280 = vunpack.c.l.b16 %v100
    %v281 = vunpack.c.l.b16 %v101
    %v282 = vunpack.c.l.b16 %v102
    %v283 = vunpack.c.l.b16 %v103
    %v284 = vunpack.c.l.b16 %v104
    %v285 = vunpack.c.l.b16 %v105
    %v286 = vunpack.c.l.b16 %v106
    %v287 = vunpack.c.l.b16 %v107
    %v288 = vunpack.c.l.b16 %v108
    %v289 = vunpack.c.l.b16 %v109
    %v290 = vunpack.c.l.b16 %v110
    %v291 = vunpack.c.l.b16 %v111
    %v292 = vunpack.c.l.b16 %v112
    %v293 = vunpack.c.l.b16 %v113
    %v294 = vunpack.c.l.b16 %v114
    %v295 = vunpack.c.l.b16 %v115
    %v296 = vunpack.c.l.b16 %v116
    %v297 = vunpack.c.l.b16 %v117
    %v298 = vunpack.c.l.b16 %v118
    %v299 = vunpack.c.l.b16 %v119
    %v300 = vunpack.c.l.b16 %v120
    %v301 = vunpack.c.l.b16 %v121
    %v302 = vunpack.c.l.b16 %v122
    %v303 = vunpack.c.l.b16 %v123
    %v304 = vunpack.c.l.b16 %v124
    %v305 = vunpack.c.l.b16 %v125
    %v306 = vunpack.c.l.b16 %v126
    %v307 = vunpack.c.l.b16 %v127
    %v308 = vpack.c.b16 %v245, %v244
    %v309 = vpack.c.b16 %v247, %v246
    %v310 = vpack.c.b16 %v249, %v248
    %v311 = vpack.c.b16 %v251, %v250
    %v312 = vpack.c.b16 %v253, %v252
    %v313 = vpack.c.b16 %v255, %v254
    %v314 = vpack.c.b16 %v257, %v256
    %v315 = vpack.c.b16 %v259, %v258
    %v316 = vpack.c.b16 %v261, %v260
    %v317 = vpack.c.b16 %v263, %v262
    %v318 = vpack.c.b16 %v265, %v264
    %v319 = vpack.c.b16 %v267, %v266
    %v320 = vpack.c.b16 %v269, %v268
    %v321 = vpack.c.b16 %v271, %v270
    %v322 = vpack.c.b16 %v273, %v272
    %v323 = vpack.c.b16 %v275, %v274
    %v324 = vpack.c.b16 %v277, %v276
    %v325 = vpack.c.b16 %v279, %v278
    %v326 = vpack.c.b16 %v281, %v280
    %v327 = vpack.c.b16 %v283, %v282
    %v328 = vpack.c.b16 %v285, %v284
    %v329 = vpack.c.b16 %v287, %v286
    %v330 = vpack.c.b16 %v289, %v288
    %v331 = vpack.c.b16 %v291, %v290
    %v332 = vpack.c.b16 %v293, %v292
    %v333 = vpack.c.b16 %v295, %v294
    %v334 = vpack.c.b16 %v297, %v296
    %v335 = vpack.c.b16 %v299, %v298
    %v336 = vpack.c.b16 %v301, %v300
    %v337 = vpack.c.b16 %v303, %v302
    %v338 = vpack.c.b16 %v305, %v304
    %v339 = vpack.c.b16 %v307, %v306
    %372 = vmatprep.subr.bf16.mxu0 0
    %373 = vmatpush1.bf16.msra.mxu0 %v308
    %374 = vmatprep.subr.bf16.mxu0 0
    %375 = vmatpush1.bf16.msra.mxu0 %v309
    %376 = vmatprep.subr.bf16.mxu0 0
    %377 = vmatpush1.bf16.msra.mxu0 %v310
    %378 = vmatprep.subr.bf16.mxu0 0
    %379 = vmatpush1.bf16.msra.mxu0 %v311
    %380 = vmatprep.subr.bf16.mxu0 0
    %381 = vmatpush1.bf16.msra.mxu0 %v312
    %382 = vmatprep.subr.bf16.mxu0 0
    %383 = vmatpush1.bf16.msra.mxu0 %v313
    %384 = vmatprep.subr.bf16.mxu0 0
    %385 = vmatpush1.bf16.msra.mxu0 %v314
    %386 = vmatprep.subr.bf16.mxu0 0
    %387 = vmatpush1.bf16.msra.mxu0 %v315
    %388 = vmatprep.subr.bf16.mxu0 0
    %389 = vmatpush1.bf16.msra.mxu0 %v316
    %390 = vmatprep.subr.bf16.mxu0 0
    %391 = vmatpush1.bf16.msra.mxu0 %v317
    %392 = vmatprep.subr.bf16.mxu0 0
    %393 = vmatpush1.bf16.msra.mxu0 %v318
    %394 = vmatprep.subr.bf16.mxu0 0
    %395 = vmatpush1.bf16.msra.mxu0 %v319
    %396 = vmatprep.subr.bf16.mxu0 0
    %397 = vmatpush1.bf16.msra.mxu0 %v320
    %398 = vmatprep.subr.bf16.mxu0 0
    %399 = vmatpush1.bf16.msra.mxu0 %v321
    %400 = vmatprep.subr.bf16.mxu0 0
    %401 = vmatpush1.bf16.msra.mxu0 %v322
    %402 = vmatprep.subr.bf16.mxu0 0
    %403 = vmatpush1.bf16.msra.mxu0 %v323
    %404 = vmatprep.mubr.bf16.mxu0 %v165
    %405 = vmatmul.mubr.bf16.gmra.mrb[0].mxu0 %v164
    %v406 = vpop.f32.mrb[0].mxu0
    %v407 = vadd.f32 0.0, %v406
    %v408 = vpop.f32.mrb[0].mxu0
    %v409 = vpop.f32.mrb[0].mxu0
    %v410 = vadd.f32 0.0, %v409
    %v411 = vpop.f32.mrb[0].mxu0
    %412 = vmatprep.mubr.bf16.mxu0 %v169
    %413 = vmatmul.mubr.bf16.gmra.mrb[0].mxu0 %v168
    %v414 = vpop.f32.mrb[0].mxu0
    %v415 = vadd.f32 0.0, %v414
    %v416 = vpop.f32.mrb[0].mxu0
    %v417 = vpop.f32.mrb[0].mxu0
    %v418 = vadd.f32 0.0, %v417
    %v419 = vpop.f32.mrb[0].mxu0
    %420 = vdwg.mxu0
    %421 = vmatprep.subr.bf16.mxu0 0
    %422 = vmatpush1.bf16.msra.mxu0 %v324
    %423 = vmatprep.subr.bf16.mxu0 0
    %424 = vmatpush1.bf16.msra.mxu0 %v325
    %425 = vmatprep.subr.bf16.mxu0 0
    %426 = vmatpush1.bf16.msra.mxu0 %v326
    %427 = vmatprep.subr.bf16.mxu0 0
    %428 = vmatpush1.bf16.msra.mxu0 %v327
    %429 = vmatprep.subr.bf16.mxu0 0
    %430 = vmatpush1.bf16.msra.mxu0 %v328
    %431 = vmatprep.subr.bf16.mxu0 0
    %432 = vmatpush1.bf16.msra.mxu0 %v329
    %433 = vmatprep.subr.bf16.mxu0 0
    %434 = vmatpush1.bf16.msra.mxu0 %v330
    %435 = vmatprep.subr.bf16.mxu0 0
    %436 = vmatpush1.bf16.msra.mxu0 %v331
    %437 = vmatprep.subr.bf16.mxu0 0
    %438 = vmatpush1.bf16.msra.mxu0 %v332
    %439 = vmatprep.subr.bf16.mxu0 0
    %440 = vmatpush1.bf16.msra.mxu0 %v333
    %441 = vmatprep.subr.bf16.mxu0 0
    %442 = vmatpush1.bf16.msra.mxu0 %v334
    %443 = vmatprep.subr.bf16.mxu0 0
    %444 = vmatpush1.bf16.msra.mxu0 %v335
    %445 = vmatprep.subr.bf16.mxu0 0
    %446 = vmatpush1.bf16.msra.mxu0 %v336
    %447 = vmatprep.subr.bf16.mxu0 0
    %448 = vmatpush1.bf16.msra.mxu0 %v337
    %449 = vmatprep.subr.bf16.mxu0 0
    %450 = vmatpush1.bf16.msra.mxu0 %v338
    %451 = vmatprep.subr.bf16.mxu0 0
    %452 = vmatpush1.bf16.msra.mxu0 %v339
    %453 = vmatprep.mubr.bf16.mxu0 %v167
    %454 = vmatmul.mubr.bf16.gmra.mrb[0].mxu0 %v166
    %v455 = vpop.f32.mrb[0].mxu0
    %v456 = vadd.f32 %v407, %v455
    %v457 = vpop.f32.mrb[0].mxu0
    %v458 = vpop.f32.mrb[0].mxu0
    %v459 = vadd.f32 %v410, %v458
    %v460 = vpop.f32.mrb[0].mxu0
    %461 = vmatprep.mubr.bf16.mxu0 %v171
    %462 = vmatmul.mubr.bf16.gmra.mrb[0].mxu0 %v170
    %v463 = vpop.f32.mrb[0].mxu0
    %v464 = vadd.f32 %v415, %v463
    %v465 = vpop.f32.mrb[0].mxu0
    %v466 = vpop.f32.mrb[0].mxu0
    %v467 = vadd.f32 %v418, %v466
    %v468 = vpop.f32.mrb[0].mxu0
    %469 = vdwg.mxu0
    %v470 = vadd.f32 %v128, %v456
    %v471 = vadd.f32 %v129, %v459
    %v472 = vadd.f32 %v130, %v464
    %v473 = vadd.f32 %v131, %v467
    %474 = vst [vmem:[#allocation7] sm:$0xff] %v470
    %475 = vst [vmem:[#allocation7 + $0x8] sm:$0xff] %v471
    %476 = vst [vmem:[#allocation7 + $0x10] sm:$0xff] %v472
    %477 = vst [vmem:[#allocation7 + $0x18] sm:$0xff] %v473
    // Predicated region
    $region26: #{tpu_custom_call.1} parent=1 // pred_check
      _
    $region27: #{tpu_custom_call.1} parent=1 // pred_check_branch
      %479 = sbr.rel (0) target = $region29
    $region28: #{tpu_custom_call.1} parent=1 // pred_region
      %s481 = ssub.s32 512, 512
      %482 = vsyncadd [#allocation4], %s481
      %s483 = sshll.u32 [#allocation7], 4
      %s484 = int_to_ptr.vmem [resolvable:$true] %s483
      %489 = dma.vmem_to_hbm [thread:$0]  %s484, 512, %s3, [#allocation4], 128, 128, 8
    $region29: #{tpu_custom_call.1} parent=1 // pred_fallthru
      _
    // Predicated region
    $region30: #{tpu_custom_call.1} parent=1 // pred_check
      _
    $region31: #{tpu_custom_call.1} parent=1 // pred_check_branch
      %491 = sbr.rel (0) target = $region33
    $region32: #{tpu_custom_call.1} parent=1 // pred_region
      %492 = dma.done [#allocation4], 512
    $region33: #{tpu_custom_call.1} parent=1 // pred_fallthru
      _
    %493 = vsyncpa [#allocation3], 1
    %494 = vsyncpa [#allocation6], 1
    %495 = vsyncpa [#allocation4], 1

</llo_original>
